<compile_context>
chip_gen: v7x
topology: tpu7x:2x2x1
jax: 0.10.0
libtpu: 0.0.40
codegen_flags: <defaults>
</compile_context>

<pallas_src>
import functools

import jax
import jax.numpy as jnp
from jax.experimental import pallas as pl
from jax.experimental.pallas import tpu as pltpu

_LANE = 128
_ROW_ALIGN = 16  # covers f32 (8-row) and bf16 (16-row) sublane packing


def _round_up(n, m):
    return ((n + m - 1) // m) * m


def _cdiv(a, b):
    return (a + b - 1) // b


def _relu_flags(num_layers, final_relu):
    """ReLU precedes Linear i iff i < final_relu_layer (matches torch ctor)."""
    final_relu_layer = num_layers if final_relu else num_layers - 1
    return tuple(i < final_relu_layer for i in range(num_layers))


def _vmem_capacity_bytes():
    try:
        cap = getattr(pltpu.get_tpu_info(), "vmem_capacity_bytes", None)
        if cap:
            return int(cap)
    except Exception:
        pass
    return 64 * 1024 * 1024  # conservative default (v7x per-TC VMEM)


def _const_spec(shape, single_buffer):
    """BlockSpec for a grid-invariant operand (weight/bias)."""
    idx = lambda i: (0, 0)
    if single_buffer and hasattr(pl, "Buffered"):
        try:
            return pl.BlockSpec(shape, idx, pipeline_mode=pl.Buffered(1))
        except TypeError:
            pass
    return pl.BlockSpec(shape, idx)


# ----------------------------------------------------------------------------
# One-time parameter packing (outside the jitted forward): pad feature dims to
# lane multiples and cast to the compute dtype. Zero padding is inert: padded
# feature columns hit zero weight rows / zero biases and ReLU(0) = 0.
# ----------------------------------------------------------------------------
def pack_params(weights, biases, compute_dtype=jnp.bfloat16):
    """weights[i]: [in_i, out_i] (= torch Linear weight.T), biases[i]: [out_i]."""
    num_layers = len(weights)
    dims = [weights[0].shape[0]] + [w.shape[1] for w in weights]
    # First in-dim stays unpadded (x is consumed at its native width); all
    # later feature dims are padded to 128 for lane-dense matmuls and stores.
    pdims = [dims[0]] + [_round_up(d, _LANE) for d in dims[1:]]
    flat = []
    for l in range(num_layers):
        w, b = weights[l], biases[l]
        wp = jnp.pad(w.astype(compute_dtype),
                     ((0, pdims[l] - w.shape[0]), (0, pdims[l + 1] - w.shape[1])))
        bp = jnp.pad(b.astype(compute_dtype),
                     (0, pdims[l + 1] - b.shape[0])).reshape(1, pdims[l + 1])
        flat += [wp, bp]
    return tuple(flat), tuple(pdims), dims[-1]


# ----------------------------------------------------------------------------
# Fused MLP kernel: the whole layer stack runs on one row-tile held in VMEM,
# so intermediate activations never touch HBM.
#   x_ref : [tm, K0]          (native input dtype, unpadded feature width)
#   w_i   : [P_i, P_{i+1}]    (compute dtype, zero-padded)
#   b_i   : [1,  P_{i+1}]     (compute dtype, zero-padded)
#   o_ref : [tm, P_L]         (out dtype, lane-dense 128-multiple width)
# ----------------------------------------------------------------------------
def _make_mlp_kernel(num_layers, relu_before, compute_dtype):
    def kernel(*refs):
        x_ref = refs[0]
        o_ref = refs[-1]
        h = x_ref[...]
        for i in range(num_layers):
            w_ref = refs[1 + 2 * i]
            b_ref = refs[2 + 2 * i]
            if relu_before[i]:
                h = jnp.maximum(h, 0)
            acc = jnp.dot(h.astype(compute_dtype), w_ref[...],
                          preferred_element_type=jnp.float32)
            acc = acc + b_ref[...].astype(jnp.float32)
            # Keep inter-layer activations in compute_dtype (halves vreg/VMEM
            # footprint); the last layer casts straight to the output dtype.
            h = acc.astype(o_ref.dtype if i == num_layers - 1 else compute_dtype)
        o_ref[...] = h

    return kernel


@functools.partial(
    jax.jit,
    static_argnames=("relu_before", "out_features", "compute_dtype",
                     "out_dtype", "tm_cap", "single_buffer_weights"))
def _mlpseq_forward_impl(x, packed_params, *, relu_before, out_features,
                         compute_dtype, out_dtype, tm_cap,
                         single_buffer_weights):
    num_layers = len(relu_before)
    assert len(packed_params) == 2 * num_layers
    out_dtype = compute_dtype if out_dtype is None else out_dtype

    M, K0 = x.shape
    pdims = [K0] + [packed_params[2 * l].shape[1] for l in range(num_layers)]
    assert packed_params[0].shape[0] == K0, "packed params / input width mismatch"

    c_item = jnp.dtype(compute_dtype).itemsize
    x_item = x.dtype.itemsize
    o_item = jnp.dtype(out_dtype).itemsize

    # --- VMEM budget -> largest row tile that fits --------------------------
    weight_bytes = sum(packed_params[i].size * c_item for i in range(2 * num_layers))
    wt_resident = 2 * weight_bytes        # worst case (default double buffering)
    vmem_cap = _vmem_capacity_bytes()
    budget = int(0.70 * vmem_cap)
    if wt_resident >= budget:
        raise ValueError("MLPSeq weights too large for a fully fused VMEM kernel")
    widest = max(pdims)
    per_row = (2 * K0 * x_item + 2 * pdims[-1] * o_item   # double-buffered x/out tiles
               + 2 * widest * 4 + 2 * widest * c_item)    # f32 acc + activation scratch
    tm_fit = max(_ROW_ALIGN,
                 ((budget - wt_resident) // per_row) // _ROW_ALIGN * _ROW_ALIGN)
    tm = min(tm_cap, tm_fit)

    # --- row tiling with tight tail handling --------------------------------
    mp_min = _round_up(M, _ROW_ALIGN)
    g = _cdiv(mp_min, tm)
    if g == 1 and mp_min >= 512:
        g = 2                              # give both v7x TensorCores work
    tm_eff = _round_up(_cdiv(mp_min, g), _ROW_ALIGN)
    mp = tm_eff * g

    xp = x if mp == M else jnp.pad(x, ((0, mp - M), (0, 0)))

    in_specs = [pl.BlockSpec((tm_eff, K0), lambda i: (i, 0))]
    for l in range(num_layers):
        in_specs.append(_const_spec((pdims[l], pdims[l + 1]), single_buffer_weights))
        in_specs.append(_const_spec((1, pdims[l + 1]), single_buffer_weights))
    out_specs = pl.BlockSpec((tm_eff, pdims[-1]), lambda i: (i, 0))

    flops = sum(2 * mp * pdims[l] * pdims[l + 1] for l in range(num_layers))
    bytes_accessed = mp * K0 * x_item + weight_bytes + mp * pdims[-1] * o_item
    vmem_limit = min(int(0.85 * vmem_cap), 100 * 1024 * 1024)

    out = pl.pallas_call(
        _make_mlp_kernel(num_layers, relu_before, compute_dtype),
        out_shape=jax.ShapeDtypeStruct((mp, pdims[-1]), out_dtype),
        grid=(g,),
        in_specs=in_specs,
        out_specs=out_specs,
        compiler_params=pltpu.CompilerParams(
            dimension_semantics=("parallel",),
            vmem_limit_bytes=vmem_limit),
        cost_estimate=pl.CostEstimate(
            flops=flops, transcendentals=0, bytes_accessed=bytes_accessed),
    )(xp, *packed_params)

    if mp == M and pdims[-1] == out_features:
        return out                          # caller may consume the dense slab
    return out[:M, :out_features]


def mlpseq_forward(x, packed_params, *, relu_before, out_features,
                   compute_dtype=jnp.bfloat16, out_dtype=None, tm_cap=1024):
    """MLPSeq forward on pre-packed params (see pack_params)."""
    kwargs = dict(relu_before=relu_before, out_features=out_features,
                  compute_dtype=compute_dtype, out_dtype=out_dtype,
                  tm_cap=tm_cap)
    try:
        return _mlpseq_forward_impl(x, packed_params,
                                    single_buffer_weights=True, **kwargs)
    except Exception:
        # Fallback if pipeline_mode=pl.Buffered(1) is rejected by this jax/libtpu.
        return _mlpseq_forward_impl(x, packed_params,
                                    single_buffer_weights=False, **kwargs)


def init_params(key, layer_sizes):
    """Deterministic synthetic Linear params; w_i stored as [in, out]."""
    num_layers = len(layer_sizes) - 1
    keys = jax.random.split(key, 2 * num_layers)
    weights, biases = [], []
    for i in range(num_layers):
        fan_in, fan_out = layer_sizes[i], layer_sizes[i + 1]
        weights.append(
            jax.random.normal(keys[2 * i], (fan_in, fan_out), jnp.float32) * 0.1)
        biases.append(
            jax.random.normal(keys[2 * i + 1], (fan_out,), jnp.float32) * 0.1)
    return weights, biases


def reference_forward(x, weights, biases, relu_before):
    """Pure-JAX f32 reference matching MLPSeq.forward."""
    h = x.astype(jnp.float32)
    for w, b, r in zip(weights, biases, relu_before):
        if r:
            h = jnp.maximum(h, 0.0)
        h = h @ w.astype(jnp.float32) + b.astype(jnp.float32)
    return h


if __name__ == "__main__":
    key = jax.random.PRNGKey(0)
    kx, kp = jax.random.split(key)

    layer_sizes = (32, 64, 64)        # MLPSeq([32, 64, 64], final_relu=False)
    final_relu = False
    batch = 8

    x = jax.random.normal(kx, (batch, layer_sizes[0]), jnp.float32)
    weights, biases = init_params(kp, layer_sizes)
    flags = _relu_flags(len(layer_sizes) - 1, final_relu)

    ref = reference_forward(x, weights, biases, flags)

    # 1) f32 compute/output path: tight numerics check of the fused kernel math.
    params_f32, _, out_feat = pack_params(weights, biases, jnp.float32)
    out_f32 = jax.block_until_ready(
        mlpseq_forward(x, params_f32, relu_before=flags, out_features=out_feat,
                       compute_dtype=jnp.float32, out_dtype=jnp.float32))
    assert out_f32.shape == (batch, layer_sizes[-1]), out_f32.shape
    assert jnp.allclose(out_f32, ref, atol=1e-3, rtol=1e-3), "f32 mismatch"

    # 2) bf16 compute path (perf default on v6e/v7x): f32 accumulation inside
    #    the dot, bf16 inter-layer activations and bf16 output.
    params_bf16, _, _ = pack_params(weights, biases, jnp.bfloat16)
    out_bf16 = jax.block_until_ready(
        mlpseq_forward(x, params_bf16, relu_before=flags, out_features=out_feat,
                       compute_dtype=jnp.bfloat16))
    assert out_bf16.shape == (batch, layer_sizes[-1]), out_bf16.shape
    assert jnp.allclose(out_bf16.astype(jnp.float32), ref,
                        atol=5e-2, rtol=5e-2), "bf16 mismatch"

    print("KERNEL_OK")
</pallas_src>

<mosaic_0001>
module attributes {stable_mosaic.version = 11 : i64} {
  func.func @kernel(%arg0: i32, %arg1: memref<16x32xf32, #tpu.memory_space<vmem>>, %arg2: memref<32x128xf32, #tpu.memory_space<vmem>>, %arg3: memref<1x128xf32, #tpu.memory_space<vmem>>, %arg4: memref<128x128xf32, #tpu.memory_space<vmem>>, %arg5: memref<1x128xf32, #tpu.memory_space<vmem>>, %arg6: memref<16x128xf32, #tpu.memory_space<vmem>>) attributes {dimension_semantics = [#tpu.dimension_semantics<parallel>], iteration_bounds = array<i64: 1>, scalar_prefetch = 0 : i64, scratch_operands = 0 : i64, tpu.core_type = #tpu.core_type<tc>, window_params = [{transform_indices = @transform_0, window_bounds = array<i64: 16, 32>}, {pipeline_mode = #tpu.pipeline_mode<synchronous>, transform_indices = @transform_1, window_bounds = array<i64: 32, 128>}, {pipeline_mode = #tpu.pipeline_mode<synchronous>, transform_indices = @transform_2, window_bounds = array<i64: 1, 128>}, {pipeline_mode = #tpu.pipeline_mode<synchronous>, transform_indices = @transform_3, window_bounds = array<i64: 128, 128>}, {pipeline_mode = #tpu.pipeline_mode<synchronous>, transform_indices = @transform_4, window_bounds = array<i64: 1, 128>}, {transform_indices = @transform_5, window_bounds = array<i64: 16, 128>}]} {
    %c0 = arith.constant 0 : index
    %c0_0 = arith.constant 0 : index
    %0 = vector.load %arg1[%c0, %c0_0] : memref<16x32xf32, #tpu.memory_space<vmem>>, vector<16x32xf32>
    %cst = arith.constant 0.000000e+00 : f32
    %1 = vector.broadcast %cst : f32 to vector<16x32xf32>
    %2 = arith.maximumf %0, %1 : vector<16x32xf32>
    %c0_1 = arith.constant 0 : index
    %c0_2 = arith.constant 0 : index
    %3 = vector.load %arg2[%c0_1, %c0_2] : memref<32x128xf32, #tpu.memory_space<vmem>>, vector<32x128xf32>
    %cst_3 = arith.constant dense<0.000000e+00> : vector<16x128xf32>
    %4 = tpu.matmul %2, %3, %cst_3 {dimension_numbers = #tpu.dot_dimension_numbers<[1], [0], [0], [1], [0, 0, 1, 1], [], []>} : vector<16x32xf32>, vector<32x128xf32>, vector<16x128xf32> -> vector<16x128xf32>
    %c0_4 = arith.constant 0 : index
    %c0_5 = arith.constant 0 : index
    %5 = vector.load %arg3[%c0_4, %c0_5] : memref<1x128xf32, #tpu.memory_space<vmem>>, vector<1x128xf32>
    %6 = vector.broadcast %5 : vector<1x128xf32> to vector<16x128xf32>
    %7 = arith.addf %4, %6 : vector<16x128xf32>
    %c0_6 = arith.constant 0 : index
    %c0_7 = arith.constant 0 : index
    %8 = vector.load %arg4[%c0_6, %c0_7] : memref<128x128xf32, #tpu.memory_space<vmem>>, vector<128x128xf32>
    %cst_8 = arith.constant dense<0.000000e+00> : vector<16x128xf32>
    %9 = tpu.matmul %7, %8, %cst_8 {dimension_numbers = #tpu.dot_dimension_numbers<[1], [0], [0], [1], [0, 0, 1, 1], [], []>} : vector<16x128xf32>, vector<128x128xf32>, vector<16x128xf32> -> vector<16x128xf32>
    %c0_9 = arith.constant 0 : index
    %c0_10 = arith.constant 0 : index
    %10 = vector.load %arg5[%c0_9, %c0_10] : memref<1x128xf32, #tpu.memory_space<vmem>>, vector<1x128xf32>
    %11 = vector.broadcast %10 : vector<1x128xf32> to vector<16x128xf32>
    %12 = arith.addf %9, %11 : vector<16x128xf32>
    %c0_11 = arith.constant 0 : index
    %c0_12 = arith.constant 0 : index
    %13 = vector.load %arg6[%c0_11, %c0_12] : memref<16x128xf32, #tpu.memory_space<vmem>>, vector<16x128xf32>
    tpu.vector_store %arg6[%c0_11, %c0_12], %12 {strides = array<i32>} : memref<16x128xf32, #tpu.memory_space<vmem>>, vector<16x128xf32>,
    return
  }
  func.func @transform_0(%arg0: i32) -> (i32, i32) {
    %c0_i32 = arith.constant 0 : i32
    %c0_i32_0 = arith.constant 0 : i32
    return %arg0, %c0_i32 : i32, i32
  }
  func.func @transform_1(%arg0: i32) -> (i32, i32) {
    %c0_i32 = arith.constant 0 : i32
    %c0_i32_0 = arith.constant 0 : i32
    %c0_i32_1 = arith.constant 0 : i32
    return %c0_i32, %c0_i32_0 : i32, i32
  }
  func.func @transform_2(%arg0: i32) -> (i32, i32) {
    %c0_i32 = arith.constant 0 : i32
    %c0_i32_0 = arith.constant 0 : i32
    %c0_i32_1 = arith.constant 0 : i32
    return %c0_i32, %c0_i32_0 : i32, i32
  }
  func.func @transform_3(%arg0: i32) -> (i32, i32) {
    %c0_i32 = arith.constant 0 : i32
    %c0_i32_0 = arith.constant 0 : i32
    %c0_i32_1 = arith.constant 0 : i32
    return %c0_i32, %c0_i32_0 : i32, i32
  }
  func.func @transform_4(%arg0: i32) -> (i32, i32) {
    %c0_i32 = arith.constant 0 : i32
    %c0_i32_0 = arith.constant 0 : i32
    %c0_i32_1 = arith.constant 0 : i32
    return %c0_i32, %c0_i32_0 : i32, i32
  }
  func.func @transform_5(%arg0: i32) -> (i32, i32) {
    %c0_i32 = arith.constant 0 : i32
    %c0_i32_0 = arith.constant 0 : i32
    return %arg0, %c0_i32 : i32, i32
  }
}

module attributes {stable_mosaic.version = 11 : i64} {
  func.func @kernel(%arg0: i32, %arg1: memref<16x32xf32, #tpu.memory_space<vmem>>, %arg2: memref<32x128xf32, #tpu.memory_space<vmem>>, %arg3: memref<1x128xf32, #tpu.memory_space<vmem>>, %arg4: memref<128x128xf32, #tpu.memory_space<vmem>>, %arg5: memref<1x128xf32, #tpu.memory_space<vmem>>, %arg6: memref<16x128xf32, #tpu.memory_space<vmem>>) attributes {dimension_semantics = [#tpu.dimension_semantics<parallel>], iteration_bounds = array<i64: 1>, scalar_prefetch = 0 : i64, scratch_operands = 0 : i64, tpu.core_type = #tpu.core_type<tc>, window_params = [{transform_indices = @transform_0, window_bounds = array<i64: 16, 32>}, {pipeline_mode = #tpu.pipeline_mode<synchronous>, transform_indices = @transform_1, window_bounds = array<i64: 32, 128>}, {pipeline_mode = #tpu.pipeline_mode<synchronous>, transform_indices = @transform_2, window_bounds = array<i64: 1, 128>}, {pipeline_mode = #tpu.pipeline_mode<synchronous>, transform_indices = @transform_3, window_bounds = array<i64: 128, 128>}, {pipeline_mode = #tpu.pipeline_mode<synchronous>, transform_indices = @transform_4, window_bounds = array<i64: 1, 128>}, {transform_indices = @transform_5, window_bounds = array<i64: 16, 128>}]} {
    %c0 = arith.constant 0 : index
    %c0_0 = arith.constant 0 : index
    %0 = vector.load %arg1[%c0, %c0_0] : memref<16x32xf32, #tpu.memory_space<vmem>>, vector<16x32xf32>
    %cst = arith.constant 0.000000e+00 : f32
    %1 = vector.broadcast %cst : f32 to vector<16x32xf32>
    %2 = arith.maximumf %0, %1 : vector<16x32xf32>
    %c0_1 = arith.constant 0 : index
    %c0_2 = arith.constant 0 : index
    %3 = vector.load %arg2[%c0_1, %c0_2] : memref<32x128xf32, #tpu.memory_space<vmem>>, vector<32x128xf32>
    %cst_3 = arith.constant dense<0.000000e+00> : vector<16x128xf32>
    %4 = tpu.matmul %2, %3, %cst_3 {dimension_numbers = #tpu.dot_dimension_numbers<[1], [0], [0], [1], [0, 0, 1, 1], [], []>} : vector<16x32xf32>, vector<32x128xf32>, vector<16x128xf32> -> vector<16x128xf32>
    %c0_4 = arith.constant 0 : index
    %c0_5 = arith.constant 0 : index
    %5 = vector.load %arg3[%c0_4, %c0_5] : memref<1x128xf32, #tpu.memory_space<vmem>>, vector<1x128xf32>
    %6 = vector.broadcast %5 : vector<1x128xf32> to vector<16x128xf32>
    %7 = arith.addf %4, %6 : vector<16x128xf32>
    %c0_6 = arith.constant 0 : index
    %c0_7 = arith.constant 0 : index
    %8 = vector.load %arg4[%c0_6, %c0_7] : memref<128x128xf32, #tpu.memory_space<vmem>>, vector<128x128xf32>
    %cst_8 = arith.constant dense<0.000000e+00> : vector<16x128xf32>
    %9 = tpu.matmul %7, %8, %cst_8 {dimension_numbers = #tpu.dot_dimension_numbers<[1], [0], [0], [1], [0, 0, 1, 1], [], []>} : vector<16x128xf32>, vector<128x128xf32>, vector<16x128xf32> -> vector<16x128xf32>
    %c0_9 = arith.constant 0 : index
    %c0_10 = arith.constant 0 : index
    %10 = vector.load %arg5[%c0_9, %c0_10] : memref<1x128xf32, #tpu.memory_space<vmem>>, vector<1x128xf32>
    %11 = vector.broadcast %10 : vector<1x128xf32> to vector<16x128xf32>
    %12 = arith.addf %9, %11 : vector<16x128xf32>
    %c0_11 = arith.constant 0 : index
    %c0_12 = arith.constant 0 : index
    %13 = vector.load %arg6[%c0_11, %c0_12] : memref<16x128xf32, #tpu.memory_space<vmem>>, vector<16x128xf32>
    tpu.vector_store %arg6[%c0_11, %c0_12], %12 {strides = array<i32>} : memref<16x128xf32, #tpu.memory_space<vmem>>, vector<16x128xf32>,
    return
  }
  func.func @transform_0(%arg0: i32) -> (i32, i32) {
    %c0_i32 = arith.constant 0 : i32
    %c0_i32_0 = arith.constant 0 : i32
    return %arg0, %c0_i32 : i32, i32
  }
  func.func @transform_1(%arg0: i32) -> (i32, i32) {
    %c0_i32 = arith.constant 0 : i32
    %c0_i32_0 = arith.constant 0 : i32
    %c0_i32_1 = arith.constant 0 : i32
    return %c0_i32, %c0_i32_0 : i32, i32
  }
  func.func @transform_2(%arg0: i32) -> (i32, i32) {
    %c0_i32 = arith.constant 0 : i32
    %c0_i32_0 = arith.constant 0 : i32
    %c0_i32_1 = arith.constant 0 : i32
    return %c0_i32, %c0_i32_0 : i32, i32
  }
  func.func @transform_3(%arg0: i32) -> (i32, i32) {
    %c0_i32 = arith.constant 0 : i32
    %c0_i32_0 = arith.constant 0 : i32
    %c0_i32_1 = arith.constant 0 : i32
    return %c0_i32, %c0_i32_0 : i32, i32
  }
  func.func @transform_4(%arg0: i32) -> (i32, i32) {
    %c0_i32 = arith.constant 0 : i32
    %c0_i32_0 = arith.constant 0 : i32
    %c0_i32_1 = arith.constant 0 : i32
    return %c0_i32, %c0_i32_0 : i32, i32
  }
  func.func @transform_5(%arg0: i32) -> (i32, i32) {
    %c0_i32 = arith.constant 0 : i32
    %c0_i32_0 = arith.constant 0 : i32
    return %arg0, %c0_i32 : i32, i32
  }
}

</mosaic_0001>

<llo_original>
// kernel: _mlpseq_forward_impl.1
$region0: #{_mlpseq_forward_impl.1}
  #allocation0 [shape = 'u32[]', space=smem, size = 0x4, offset = 0x4, fixed_abs, tag = 'smem constant byte address 0x4 - core index']
  #allocation1 [shape = 'u32[144,128]{1,0:T(1,128)}', space=vmem, size = 0x12000, scoped, tag = 'internal scratch']
  %s0 = inlined_call_operand.vmem [shape: f32[16,32], index: 0, kind: input, shape index: {}]
  %s1 = inlined_call_operand.hbm [shape: f32[32,128], index: 1, kind: input, shape index: {}]
  %s2 = inlined_call_operand.vmem [shape: f32[1,128], index: 2, kind: input, shape index: {}]
  %s3 = inlined_call_operand.hbm [shape: f32[128,128], index: 3, kind: input, shape index: {}]
  %s4 = inlined_call_operand.vmem [shape: f32[1,128], index: 4, kind: input, shape index: {}]
  %s5 = inlined_call_operand.vmem [shape: f32[16,128], index: 5, kind: output, shape index: {}]
  %s6 = sld [smem:[#allocation0]]
  $region38: #{_mlpseq_forward_impl.1} parent=0
    _
  %s8 = ssub.s32 1, %s6
  %s9 = scalar_select 0, %s8, %s6
  $region1: #{_mlpseq_forward_impl.1} parent=0
    #allocation2 [shape = 'u8[16384]{0}', space=vmem, size = 0x4000, scoped, tag = 'input window, operand 1, single buffered']
    #allocation3 [shape = 's32[1]{0}', space=sflag, size = 0x4, scoped, tag = 'scoped memory for _mlpseq_forward_impl.1']
    #allocation4 [shape = 'u8[65536]{0}', space=vmem, size = 0x10000, scoped, tag = 'input window, operand 3, single buffered']
    #allocation5 [shape = 's32[1]{0}', space=sflag, size = 0x4, scoped, tag = 'scoped memory for _mlpseq_forward_impl.1']
    %10 = vsyncpa [#allocation3], 0
    %11 = vsyncpa [#allocation5], 0
    // Predicated region
    $region2: #{_mlpseq_forward_impl.1} parent=1 // pred_check
      _
    $region3: #{_mlpseq_forward_impl.1} parent=1 // pred_check_branch
      %13 = sbr.rel (0) target = $region5
    $region4: #{_mlpseq_forward_impl.1} parent=1 // pred_region
      _
    $region5: #{_mlpseq_forward_impl.1} parent=1 // pred_fallthru
      _
    // Predicated region
    $region6: #{_mlpseq_forward_impl.1} parent=1 // pred_check
      _
    $region7: #{_mlpseq_forward_impl.1} parent=1 // pred_check_branch
      %15 = sbr.rel (0) target = $region9
    $region8: #{_mlpseq_forward_impl.1} parent=1 // pred_region
      %s17 = ssub.s32 512, 512
      %18 = vsyncadd [#allocation3], %s17
      %s19 = sshll.u32 [#allocation2], 4
      %s20 = int_to_ptr.vmem [resolvable:$true] %s19
      %25 = dma.hbm_to_vmem [thread:$0]  %s1, 512, %s20, [#allocation3], 128, 128, 8
    $region9: #{_mlpseq_forward_impl.1} parent=1 // pred_fallthru
      _
    // Predicated region
    $region10: #{_mlpseq_forward_impl.1} parent=1 // pred_check
      _
    $region11: #{_mlpseq_forward_impl.1} parent=1 // pred_check_branch
      %27 = sbr.rel (0) target = $region13
    $region12: #{_mlpseq_forward_impl.1} parent=1 // pred_region
      _
    $region13: #{_mlpseq_forward_impl.1} parent=1 // pred_fallthru
      _
    // Predicated region
    $region14: #{_mlpseq_forward_impl.1} parent=1 // pred_check
      _
    $region15: #{_mlpseq_forward_impl.1} parent=1 // pred_check_branch
      %29 = sbr.rel (0) target = $region17
    $region16: #{_mlpseq_forward_impl.1} parent=1 // pred_region
      %s31 = ssub.s32 2048, 2048
      %32 = vsyncadd [#allocation5], %s31
      %s33 = sshll.u32 [#allocation4], 4
      %s34 = int_to_ptr.vmem [resolvable:$true] %s33
      %39 = dma.hbm_to_vmem [thread:$0]  %s3, 2048, %s34, [#allocation5], 128, 128, 8
    $region17: #{_mlpseq_forward_impl.1} parent=1 // pred_fallthru
      _
    // Predicated region
    $region18: #{_mlpseq_forward_impl.1} parent=1 // pred_check
      _
    $region19: #{_mlpseq_forward_impl.1} parent=1 // pred_check_branch
      %41 = sbr.rel (0) target = $region21
    $region20: #{_mlpseq_forward_impl.1} parent=1 // pred_region
      _
    $region21: #{_mlpseq_forward_impl.1} parent=1 // pred_fallthru
      _
    // Predicated region
    $region22: #{_mlpseq_forward_impl.1} parent=1 // pred_check
      _
    $region23: #{_mlpseq_forward_impl.1} parent=1 // pred_check_branch
      %43 = sbr.rel (0) target = $region25
    $region24: #{_mlpseq_forward_impl.1} parent=1 // pred_region
      %44 = dma.done [#allocation3], 512
    $region25: #{_mlpseq_forward_impl.1} parent=1 // pred_fallthru
      _
    // Predicated region
    $region26: #{_mlpseq_forward_impl.1} parent=1 // pred_check
      _
    $region27: #{_mlpseq_forward_impl.1} parent=1 // pred_check_branch
      %46 = sbr.rel (0) target = $region29
    $region28: #{_mlpseq_forward_impl.1} parent=1 // pred_region
      %47 = dma.done [#allocation5], 2048
    $region29: #{_mlpseq_forward_impl.1} parent=1 // pred_fallthru
      _
    %v48 = vld [vmem:[%s0] sm:$0xff]
    %v49 = vld [vmem:[%s0 + $0x8] sm:$0xff]
    %v50 = vmax.f32 %v48, 0.0
    %v51 = vmax.f32 %v49, 0.0
    %v52 = vld [vmem:[#allocation2] sm:$0xff]
    %v53 = vld [vmem:[#allocation2 + $0x8] sm:$0xff]
    %v54 = vld [vmem:[#allocation2 + $0x10] sm:$0xff]
    %v55 = vld [vmem:[#allocation2 + $0x18] sm:$0xff]
    %v56 = vld [vmem:[%s2] sm:$0x1]
    %v58 = vlaneseq
    %v59 = vshrl.u32 %v58, 7
    %v60 = vsub.s32 0, %v59
    %v61 = vrot.slane %v56, %v60
    %vm63 = vcmask 261120
    %v65 = vsel %vm63, %v50, 0
    %v68 = vsel %vm63, %v51, 0
    %70 = vmatprep.subr.mxu0 0.0
    %71 = vmatpush1.msra.mxu0 %v52
    %72 = vmatprep.subr.mxu0 0.0
    %73 = vmatpush1.msra.mxu0 %v53
    %74 = vmatprep.subr.mxu0 0.0
    %75 = vmatpush1.msra.mxu0 %v54
    %76 = vmatprep.subr.mxu0 0.0
    %77 = vmatpush1.msra.mxu0 %v55
    %78 = vmatprep.subr.mxu0 0.0
    %79 = vmatpush1.msra.mxu0 0.0
    %80 = vmatprep.subr.mxu0 0.0
    %81 = vmatpush1.msra.mxu0 0.0
    %82 = vmatprep.subr.mxu0 0.0
    %83 = vmatpush1.msra.mxu0 0.0
    %84 = vmatprep.subr.mxu0 0.0
    %85 = vmatpush1.msra.mxu0 0.0
    %86 = vmatprep.subr.mxu0 0.0
    %87 = vmatpush1.msra.mxu0 0.0
    %88 = vmatprep.subr.mxu0 0.0
    %89 = vmatpush1.msra.mxu0 0.0
    %90 = vmatprep.subr.mxu0 0.0
    %91 = vmatpush1.msra.mxu0 0.0
    %92 = vmatprep.subr.mxu0 0.0
    %93 = vmatpush1.msra.mxu0 0.0
    %94 = vmatprep.subr.mxu0 0.0
    %95 = vmatpush1.msra.mxu0 0.0
    %96 = vmatprep.subr.mxu0 0.0
    %97 = vmatpush1.msra.mxu0 0.0
    %98 = vmatprep.subr.mxu0 0.0
    %99 = vmatpush1.msra.mxu0 0.0
    %100 = vmatprep.subr.mxu0 0.0
    %101 = vmatpush1.msra.mxu0 0.0
    %102 = vmatprep.subr.mxu0 0.0
    %103 = vmatpush1.msra.mxu0 0.0
    %104 = vmatprep.subr.mxu0 0.0
    %105 = vmatpush1.msra.mxu0 0.0
    %106 = vmatprep.subr.mxu0 0.0
    %107 = vmatpush1.msra.mxu0 0.0
    %108 = vmatprep.subr.mxu0 0.0
    %109 = vmatpush1.msra.mxu0 0.0
    %110 = vmatprep.subr.mxu0 0.0
    %111 = vmatpush1.msra.mxu0 0.0
    %112 = vmatprep.subr.mxu0 0.0
    %113 = vmatpush1.msra.mxu0 0.0
    %114 = vmatprep.subr.mxu0 0.0
    %115 = vmatpush1.msra.mxu0 0.0
    %116 = vmatprep.subr.mxu0 0.0
    %117 = vmatpush1.msra.mxu0 0.0
    %118 = vmatprep.subr.mxu0 0.0
    %119 = vmatpush1.msra.mxu0 0.0
    %120 = vmatprep.subr.mxu0 0.0
    %121 = vmatpush1.msra.mxu0 0.0
    %122 = vmatprep.subr.mxu0 0.0
    %123 = vmatpush1.msra.mxu0 0.0
    %124 = vmatprep.subr.mxu0 0.0
    %125 = vmatpush1.msra.mxu0 0.0
    %126 = vmatprep.subr.mxu0 0.0
    %127 = vmatpush1.msra.mxu0 0.0
    %128 = vmatprep.subr.mxu0 0.0
    %129 = vmatpush1.msra.mxu0 0.0
    %130 = vmatprep.subr.mxu0 0.0
    %131 = vmatpush1.msra.mxu0 0.0
    %132 = vmatprep.subr.mxu0 0.0
    %133 = vmatpush1.msra.mxu0 0.0
    %134 = vmatprep.mubr.f32.mxu0 0.0
    %135 = vmatmul.mubr.f32.gmra.mrb[0].mxu0 %v65
    %v136 = vpop.f32.mrb[0].mxu0
    %v137 = vadd.f32 %v61, %v136
    %v138 = vpop.f32.mrb[0].mxu0
    %139 = vmatprep.mubr.f32.mxu0 0.0
    %140 = vmatmul.mubr.f32.gmra.mrb[0].mxu0 %v68
    %v141 = vpop.f32.mrb[0].mxu0
    %v142 = vadd.f32 %v61, %v141
    %v143 = vpop.f32.mrb[0].mxu0
    %144 = vdwg.mxu0
    %v145 = vld [vmem:[#allocation4] sm:$0xff]
    %v146 = vld [vmem:[#allocation4 + $0x8] sm:$0xff]
    %v147 = vld [vmem:[#allocation4 + $0x10] sm:$0xff]
    %v148 = vld [vmem:[#allocation4 + $0x18] sm:$0xff]
    %v149 = vld [vmem:[#allocation4 + $0x20] sm:$0xff]
    %v150 = vld [vmem:[#allocation4 + $0x28] sm:$0xff]
    %v151 = vld [vmem:[#allocation4 + $0x30] sm:$0xff]
    %v152 = vld [vmem:[#allocation4 + $0x38] sm:$0xff]
    %v153 = vld [vmem:[#allocation4 + $0x40] sm:$0xff]
    %v154 = vld [vmem:[#allocation4 + $0x48] sm:$0xff]
    %v155 = vld [vmem:[#allocation4 + $0x50] sm:$0xff]
    %v156 = vld [vmem:[#allocation4 + $0x58] sm:$0xff]
    %v157 = vld [vmem:[#allocation4 + $0x60] sm:$0xff]
    %v158 = vld [vmem:[#allocation4 + $0x68] sm:$0xff]
    %v159 = vld [vmem:[#allocation4 + $0x70] sm:$0xff]
    %v160 = vld [vmem:[#allocation4 + $0x78] sm:$0xff]
    %v161 = vld [vmem:[%s4] sm:$0x1]
    %v163 = vlaneseq
    %v164 = vshrl.u32 %v163, 7
    %v165 = vsub.s32 0, %v164
    %v166 = vrot.slane %v161, %v165
    %168 = vmatprep.subr.mxu0 0.0
    %169 = vmatpush1.msra.mxu0 %v145
    %170 = vmatprep.subr.mxu0 0.0
    %171 = vmatpush1.msra.mxu0 %v146
    %172 = vmatprep.subr.mxu0 0.0
    %173 = vmatpush1.msra.mxu0 %v147
    %174 = vmatprep.subr.mxu0 0.0
    %175 = vmatpush1.msra.mxu0 %v148
    %176 = vmatprep.subr.mxu0 0.0
    %177 = vmatpush1.msra.mxu0 %v149
    %178 = vmatprep.subr.mxu0 0.0
    %179 = vmatpush1.msra.mxu0 %v150
    %180 = vmatprep.subr.mxu0 0.0
    %181 = vmatpush1.msra.mxu0 %v151
    %182 = vmatprep.subr.mxu0 0.0
    %183 = vmatpush1.msra.mxu0 %v152
    %184 = vmatprep.subr.mxu0 0.0
    %185 = vmatpush1.msra.mxu0 %v153
    %186 = vmatprep.subr.mxu0 0.0
    %187 = vmatpush1.msra.mxu0 %v154
    %188 = vmatprep.subr.mxu0 0.0
    %189 = vmatpush1.msra.mxu0 %v155
    %190 = vmatprep.subr.mxu0 0.0
    %191 = vmatpush1.msra.mxu0 %v156
    %192 = vmatprep.subr.mxu0 0.0
    %193 = vmatpush1.msra.mxu0 %v157
    %194 = vmatprep.subr.mxu0 0.0
    %195 = vmatpush1.msra.mxu0 %v158
    %196 = vmatprep.subr.mxu0 0.0
    %197 = vmatpush1.msra.mxu0 %v159
    %198 = vmatprep.subr.mxu0 0.0
    %199 = vmatpush1.msra.mxu0 %v160
    %200 = vmatprep.subr.mxu0 0.0
    %201 = vmatpush1.msra.mxu0 0.0
    %202 = vmatprep.subr.mxu0 0.0
    %203 = vmatpush1.msra.mxu0 0.0
    %204 = vmatprep.subr.mxu0 0.0
    %205 = vmatpush1.msra.mxu0 0.0
    %206 = vmatprep.subr.mxu0 0.0
    %207 = vmatpush1.msra.mxu0 0.0
    %208 = vmatprep.subr.mxu0 0.0
    %209 = vmatpush1.msra.mxu0 0.0
    %210 = vmatprep.subr.mxu0 0.0
    %211 = vmatpush1.msra.mxu0 0.0
    %212 = vmatprep.subr.mxu0 0.0
    %213 = vmatpush1.msra.mxu0 0.0
    %214 = vmatprep.subr.mxu0 0.0
    %215 = vmatpush1.msra.mxu0 0.0
    %216 = vmatprep.subr.mxu0 0.0
    %217 = vmatpush1.msra.mxu0 0.0
    %218 = vmatprep.subr.mxu0 0.0
    %219 = vmatpush1.msra.mxu0 0.0
    %220 = vmatprep.subr.mxu0 0.0
    %221 = vmatpush1.msra.mxu0 0.0
    %222 = vmatprep.subr.mxu0 0.0
    %223 = vmatpush1.msra.mxu0 0.0
    %224 = vmatprep.subr.mxu0 0.0
    %225 = vmatpush1.msra.mxu0 0.0
    %226 = vmatprep.subr.mxu0 0.0
    %227 = vmatpush1.msra.mxu0 0.0
    %228 = vmatprep.subr.mxu0 0.0
    %229 = vmatpush1.msra.mxu0 0.0
    %230 = vmatprep.subr.mxu0 0.0
    %231 = vmatpush1.msra.mxu0 0.0
    %232 = vmatprep.mubr.f32.mxu0 0.0
    %233 = vmatmul.mubr.f32.gmra.mrb[0].mxu0 %v137
    %v234 = vpop.f32.mrb[0].mxu0
    %v235 = vadd.f32 %v166, %v234
    %v236 = vpop.f32.mrb[0].mxu0
    %237 = vmatprep.mubr.f32.mxu0 0.0
    %238 = vmatmul.mubr.f32.gmra.mrb[0].mxu0 %v142
    %v239 = vpop.f32.mrb[0].mxu0
    %v240 = vadd.f32 %v166, %v239
    %v241 = vpop.f32.mrb[0].mxu0
    %242 = vdwg.mxu0
    %243 = vst [vmem:[%s5] sm:$0xff] %v235
    %244 = vst [vmem:[%s5 + $0x8] sm:$0xff] %v240
    // Predicated region
    $region30: #{_mlpseq_forward_impl.1} parent=1 // pred_check
      _
    $region31: #{_mlpseq_forward_impl.1} parent=1 // pred_check_branch
      %246 = sbr.rel (0) target = $region33
    $region32: #{_mlpseq_forward_impl.1} parent=1 // pred_region
      _
    $region33: #{_mlpseq_forward_impl.1} parent=1 // pred_fallthru
      _
    // Predicated region
    $region34: #{_mlpseq_forward_impl.1} parent=1 // pred_check
      _
    $region35: #{_mlpseq_forward_impl.1} parent=1 // pred_check_branch
      %248 = sbr.rel (0) target = $region37
    $region36: #{_mlpseq_forward_impl.1} parent=1 // pred_region
      _
    $region37: #{_mlpseq_forward_impl.1} parent=1 // pred_fallthru
      _
    %249 = vsyncpa [#allocation3], 1
    %250 = vsyncpa [#allocation5], 1

// kernel: _mlpseq_forward_impl.1
$region0: #{_mlpseq_forward_impl.1}
  #allocation0 [shape = 'u32[]', space=smem, size = 0x4, offset = 0x4, fixed_abs, tag = 'smem constant byte address 0x4 - core index']
  #allocation1 [shape = 'u32[144,128]{1,0:T(1,128)}', space=vmem, size = 0x12000, scoped, tag = 'internal scratch']
  %s0 = inlined_call_operand.vmem [shape: f32[16,32], index: 0, kind: input, shape index: {}]
  %s1 = inlined_call_operand.hbm [shape: f32[32,128], index: 1, kind: input, shape index: {}]
  %s2 = inlined_call_operand.vmem [shape: f32[1,128], index: 2, kind: input, shape index: {}]
  %s3 = inlined_call_operand.hbm [shape: f32[128,128], index: 3, kind: input, shape index: {}]
  %s4 = inlined_call_operand.vmem [shape: f32[1,128], index: 4, kind: input, shape index: {}]
  %s5 = inlined_call_operand.vmem [shape: f32[16,128], index: 5, kind: output, shape index: {}]
  %s6 = sld [smem:[#allocation0]]
  $region38: #{_mlpseq_forward_impl.1} parent=0
    _
  %s8 = ssub.s32 1, %s6
  %s9 = scalar_select 0, %s8, %s6
  $region1: #{_mlpseq_forward_impl.1} parent=0
    #allocation2 [shape = 'u8[16384]{0}', space=vmem, size = 0x4000, scoped, tag = 'input window, operand 1, single buffered']
    #allocation3 [shape = 's32[1]{0}', space=sflag, size = 0x4, scoped, tag = 'scoped memory for _mlpseq_forward_impl.1']
    #allocation4 [shape = 'u8[65536]{0}', space=vmem, size = 0x10000, scoped, tag = 'input window, operand 3, single buffered']
    #allocation5 [shape = 's32[1]{0}', space=sflag, size = 0x4, scoped, tag = 'scoped memory for _mlpseq_forward_impl.1']
    %10 = vsyncpa [#allocation3], 0
    %11 = vsyncpa [#allocation5], 0
    // Predicated region
    $region2: #{_mlpseq_forward_impl.1} parent=1 // pred_check
      _
    $region3: #{_mlpseq_forward_impl.1} parent=1 // pred_check_branch
      %13 = sbr.rel (0) target = $region5
    $region4: #{_mlpseq_forward_impl.1} parent=1 // pred_region
      _
    $region5: #{_mlpseq_forward_impl.1} parent=1 // pred_fallthru
      _
    // Predicated region
    $region6: #{_mlpseq_forward_impl.1} parent=1 // pred_check
      _
    $region7: #{_mlpseq_forward_impl.1} parent=1 // pred_check_branch
      %15 = sbr.rel (0) target = $region9
    $region8: #{_mlpseq_forward_impl.1} parent=1 // pred_region
      %s17 = ssub.s32 512, 512
      %18 = vsyncadd [#allocation3], %s17
      %s19 = sshll.u32 [#allocation2], 4
      %s20 = int_to_ptr.vmem [resolvable:$true] %s19
      %25 = dma.hbm_to_vmem [thread:$0]  %s1, 512, %s20, [#allocation3], 128, 128, 8
    $region9: #{_mlpseq_forward_impl.1} parent=1 // pred_fallthru
      _
    // Predicated region
    $region10: #{_mlpseq_forward_impl.1} parent=1 // pred_check
      _
    $region11: #{_mlpseq_forward_impl.1} parent=1 // pred_check_branch
      %27 = sbr.rel (0) target = $region13
    $region12: #{_mlpseq_forward_impl.1} parent=1 // pred_region
      _
    $region13: #{_mlpseq_forward_impl.1} parent=1 // pred_fallthru
      _
    // Predicated region
    $region14: #{_mlpseq_forward_impl.1} parent=1 // pred_check
      _
    $region15: #{_mlpseq_forward_impl.1} parent=1 // pred_check_branch
      %29 = sbr.rel (0) target = $region17
    $region16: #{_mlpseq_forward_impl.1} parent=1 // pred_region
      %s31 = ssub.s32 2048, 2048
      %32 = vsyncadd [#allocation5], %s31
      %s33 = sshll.u32 [#allocation4], 4
      %s34 = int_to_ptr.vmem [resolvable:$true] %s33
      %39 = dma.hbm_to_vmem [thread:$0]  %s3, 2048, %s34, [#allocation5], 128, 128, 8
    $region17: #{_mlpseq_forward_impl.1} parent=1 // pred_fallthru
      _
    // Predicated region
    $region18: #{_mlpseq_forward_impl.1} parent=1 // pred_check
      _
    $region19: #{_mlpseq_forward_impl.1} parent=1 // pred_check_branch
      %41 = sbr.rel (0) target = $region21
    $region20: #{_mlpseq_forward_impl.1} parent=1 // pred_region
      _
    $region21: #{_mlpseq_forward_impl.1} parent=1 // pred_fallthru
      _
    // Predicated region
    $region22: #{_mlpseq_forward_impl.1} parent=1 // pred_check
      _
    $region23: #{_mlpseq_forward_impl.1} parent=1 // pred_check_branch
      %43 = sbr.rel (0) target = $region25
    $region24: #{_mlpseq_forward_impl.1} parent=1 // pred_region
      %44 = dma.done [#allocation3], 512
    $region25: #{_mlpseq_forward_impl.1} parent=1 // pred_fallthru
      _
    // Predicated region
    $region26: #{_mlpseq_forward_impl.1} parent=1 // pred_check
      _
    $region27: #{_mlpseq_forward_impl.1} parent=1 // pred_check_branch
      %46 = sbr.rel (0) target = $region29
    $region28: #{_mlpseq_forward_impl.1} parent=1 // pred_region
      %47 = dma.done [#allocation5], 2048
    $region29: #{_mlpseq_forward_impl.1} parent=1 // pred_fallthru
      _
    %v48 = vld [vmem:[%s0] sm:$0xff]
    %v49 = vld [vmem:[%s0 + $0x8] sm:$0xff]
    %v50 = vmax.f32 %v48, 0.0
    %v51 = vmax.f32 %v49, 0.0
    %v52 = vld [vmem:[#allocation2] sm:$0xff]
    %v53 = vld [vmem:[#allocation2 + $0x8] sm:$0xff]
    %v54 = vld [vmem:[#allocation2 + $0x10] sm:$0xff]
    %v55 = vld [vmem:[#allocation2 + $0x18] sm:$0xff]
    %v56 = vld [vmem:[%s2] sm:$0x1]
    %v58 = vlaneseq
    %v59 = vshrl.u32 %v58, 7
    %v60 = vsub.s32 0, %v59
    %v61 = vrot.slane %v56, %v60
    %vm63 = vcmask 261120
    %v65 = vsel %vm63, %v50, 0
    %v68 = vsel %vm63, %v51, 0
    %70 = vmatprep.subr.mxu0 0.0
    %71 = vmatpush1.msra.mxu0 %v52
    %72 = vmatprep.subr.mxu0 0.0
    %73 = vmatpush1.msra.mxu0 %v53
    %74 = vmatprep.subr.mxu0 0.0
    %75 = vmatpush1.msra.mxu0 %v54
    %76 = vmatprep.subr.mxu0 0.0
    %77 = vmatpush1.msra.mxu0 %v55
    %78 = vmatprep.subr.mxu0 0.0
    %79 = vmatpush1.msra.mxu0 0.0
    %80 = vmatprep.subr.mxu0 0.0
    %81 = vmatpush1.msra.mxu0 0.0
    %82 = vmatprep.subr.mxu0 0.0
    %83 = vmatpush1.msra.mxu0 0.0
    %84 = vmatprep.subr.mxu0 0.0
    %85 = vmatpush1.msra.mxu0 0.0
    %86 = vmatprep.subr.mxu0 0.0
    %87 = vmatpush1.msra.mxu0 0.0
    %88 = vmatprep.subr.mxu0 0.0
    %89 = vmatpush1.msra.mxu0 0.0
    %90 = vmatprep.subr.mxu0 0.0
    %91 = vmatpush1.msra.mxu0 0.0
    %92 = vmatprep.subr.mxu0 0.0
    %93 = vmatpush1.msra.mxu0 0.0
    %94 = vmatprep.subr.mxu0 0.0
    %95 = vmatpush1.msra.mxu0 0.0
    %96 = vmatprep.subr.mxu0 0.0
    %97 = vmatpush1.msra.mxu0 0.0
    %98 = vmatprep.subr.mxu0 0.0
    %99 = vmatpush1.msra.mxu0 0.0
    %100 = vmatprep.subr.mxu0 0.0
    %101 = vmatpush1.msra.mxu0 0.0
    %102 = vmatprep.subr.mxu0 0.0
    %103 = vmatpush1.msra.mxu0 0.0
    %104 = vmatprep.subr.mxu0 0.0
    %105 = vmatpush1.msra.mxu0 0.0
    %106 = vmatprep.subr.mxu0 0.0
    %107 = vmatpush1.msra.mxu0 0.0
    %108 = vmatprep.subr.mxu0 0.0
    %109 = vmatpush1.msra.mxu0 0.0
    %110 = vmatprep.subr.mxu0 0.0
    %111 = vmatpush1.msra.mxu0 0.0
    %112 = vmatprep.subr.mxu0 0.0
    %113 = vmatpush1.msra.mxu0 0.0
    %114 = vmatprep.subr.mxu0 0.0
    %115 = vmatpush1.msra.mxu0 0.0
    %116 = vmatprep.subr.mxu0 0.0
    %117 = vmatpush1.msra.mxu0 0.0
    %118 = vmatprep.subr.mxu0 0.0
    %119 = vmatpush1.msra.mxu0 0.0
    %120 = vmatprep.subr.mxu0 0.0
    %121 = vmatpush1.msra.mxu0 0.0
    %122 = vmatprep.subr.mxu0 0.0
    %123 = vmatpush1.msra.mxu0 0.0
    %124 = vmatprep.subr.mxu0 0.0
    %125 = vmatpush1.msra.mxu0 0.0
    %126 = vmatprep.subr.mxu0 0.0
    %127 = vmatpush1.msra.mxu0 0.0
    %128 = vmatprep.subr.mxu0 0.0
    %129 = vmatpush1.msra.mxu0 0.0
    %130 = vmatprep.subr.mxu0 0.0
    %131 = vmatpush1.msra.mxu0 0.0
    %132 = vmatprep.subr.mxu0 0.0
    %133 = vmatpush1.msra.mxu0 0.0
    %134 = vmatprep.mubr.f32.mxu0 0.0
    %135 = vmatmul.mubr.f32.gmra.mrb[0].mxu0 %v65
    %v136 = vpop.f32.mrb[0].mxu0
    %v137 = vadd.f32 %v61, %v136
    %v138 = vpop.f32.mrb[0].mxu0
    %139 = vmatprep.mubr.f32.mxu0 0.0
    %140 = vmatmul.mubr.f32.gmra.mrb[0].mxu0 %v68
    %v141 = vpop.f32.mrb[0].mxu0
    %v142 = vadd.f32 %v61, %v141
    %v143 = vpop.f32.mrb[0].mxu0
    %144 = vdwg.mxu0
    %v145 = vld [vmem:[#allocation4] sm:$0xff]
    %v146 = vld [vmem:[#allocation4 + $0x8] sm:$0xff]
    %v147 = vld [vmem:[#allocation4 + $0x10] sm:$0xff]
    %v148 = vld [vmem:[#allocation4 + $0x18] sm:$0xff]
    %v149 = vld [vmem:[#allocation4 + $0x20] sm:$0xff]
    %v150 = vld [vmem:[#allocation4 + $0x28] sm:$0xff]
    %v151 = vld [vmem:[#allocation4 + $0x30] sm:$0xff]
    %v152 = vld [vmem:[#allocation4 + $0x38] sm:$0xff]
    %v153 = vld [vmem:[#allocation4 + $0x40] sm:$0xff]
    %v154 = vld [vmem:[#allocation4 + $0x48] sm:$0xff]
    %v155 = vld [vmem:[#allocation4 + $0x50] sm:$0xff]
    %v156 = vld [vmem:[#allocation4 + $0x58] sm:$0xff]
    %v157 = vld [vmem:[#allocation4 + $0x60] sm:$0xff]
    %v158 = vld [vmem:[#allocation4 + $0x68] sm:$0xff]
    %v159 = vld [vmem:[#allocation4 + $0x70] sm:$0xff]
    %v160 = vld [vmem:[#allocation4 + $0x78] sm:$0xff]
    %v161 = vld [vmem:[%s4] sm:$0x1]
    %v163 = vlaneseq
    %v164 = vshrl.u32 %v163, 7
    %v165 = vsub.s32 0, %v164
    %v166 = vrot.slane %v161, %v165
    %168 = vmatprep.subr.mxu0 0.0
    %169 = vmatpush1.msra.mxu0 %v145
    %170 = vmatprep.subr.mxu0 0.0
    %171 = vmatpush1.msra.mxu0 %v146
    %172 = vmatprep.subr.mxu0 0.0
    %173 = vmatpush1.msra.mxu0 %v147
    %174 = vmatprep.subr.mxu0 0.0
    %175 = vmatpush1.msra.mxu0 %v148
    %176 = vmatprep.subr.mxu0 0.0
    %177 = vmatpush1.msra.mxu0 %v149
    %178 = vmatprep.subr.mxu0 0.0
    %179 = vmatpush1.msra.mxu0 %v150
    %180 = vmatprep.subr.mxu0 0.0
    %181 = vmatpush1.msra.mxu0 %v151
    %182 = vmatprep.subr.mxu0 0.0
    %183 = vmatpush1.msra.mxu0 %v152
    %184 = vmatprep.subr.mxu0 0.0
    %185 = vmatpush1.msra.mxu0 %v153
    %186 = vmatprep.subr.mxu0 0.0
    %187 = vmatpush1.msra.mxu0 %v154
    %188 = vmatprep.subr.mxu0 0.0
    %189 = vmatpush1.msra.mxu0 %v155
    %190 = vmatprep.subr.mxu0 0.0
    %191 = vmatpush1.msra.mxu0 %v156
    %192 = vmatprep.subr.mxu0 0.0
    %193 = vmatpush1.msra.mxu0 %v157
    %194 = vmatprep.subr.mxu0 0.0
    %195 = vmatpush1.msra.mxu0 %v158
    %196 = vmatprep.subr.mxu0 0.0
    %197 = vmatpush1.msra.mxu0 %v159
    %198 = vmatprep.subr.mxu0 0.0
    %199 = vmatpush1.msra.mxu0 %v160
    %200 = vmatprep.subr.mxu0 0.0
    %201 = vmatpush1.msra.mxu0 0.0
    %202 = vmatprep.subr.mxu0 0.0
    %203 = vmatpush1.msra.mxu0 0.0
    %204 = vmatprep.subr.mxu0 0.0
    %205 = vmatpush1.msra.mxu0 0.0
    %206 = vmatprep.subr.mxu0 0.0
    %207 = vmatpush1.msra.mxu0 0.0
    %208 = vmatprep.subr.mxu0 0.0
    %209 = vmatpush1.msra.mxu0 0.0
    %210 = vmatprep.subr.mxu0 0.0
    %211 = vmatpush1.msra.mxu0 0.0
    %212 = vmatprep.subr.mxu0 0.0
    %213 = vmatpush1.msra.mxu0 0.0
    %214 = vmatprep.subr.mxu0 0.0
    %215 = vmatpush1.msra.mxu0 0.0
    %216 = vmatprep.subr.mxu0 0.0
    %217 = vmatpush1.msra.mxu0 0.0
    %218 = vmatprep.subr.mxu0 0.0
    %219 = vmatpush1.msra.mxu0 0.0
    %220 = vmatprep.subr.mxu0 0.0
    %221 = vmatpush1.msra.mxu0 0.0
    %222 = vmatprep.subr.mxu0 0.0
    %223 = vmatpush1.msra.mxu0 0.0
    %224 = vmatprep.subr.mxu0 0.0
    %225 = vmatpush1.msra.mxu0 0.0
    %226 = vmatprep.subr.mxu0 0.0
    %227 = vmatpush1.msra.mxu0 0.0
    %228 = vmatprep.subr.mxu0 0.0
    %229 = vmatpush1.msra.mxu0 0.0
    %230 = vmatprep.subr.mxu0 0.0
    %231 = vmatpush1.msra.mxu0 0.0
    %232 = vmatprep.mubr.f32.mxu0 0.0
    %233 = vmatmul.mubr.f32.gmra.mrb[0].mxu0 %v137
    %v234 = vpop.f32.mrb[0].mxu0
    %v235 = vadd.f32 %v166, %v234
    %v236 = vpop.f32.mrb[0].mxu0
    %237 = vmatprep.mubr.f32.mxu0 0.0
    %238 = vmatmul.mubr.f32.gmra.mrb[0].mxu0 %v142
    %v239 = vpop.f32.mrb[0].mxu0
    %v240 = vadd.f32 %v166, %v239
    %v241 = vpop.f32.mrb[0].mxu0
    %242 = vdwg.mxu0
    %243 = vst [vmem:[%s5] sm:$0xff] %v235
    %244 = vst [vmem:[%s5 + $0x8] sm:$0xff] %v240
    // Predicated region
    $region30: #{_mlpseq_forward_impl.1} parent=1 // pred_check
      _
    $region31: #{_mlpseq_forward_impl.1} parent=1 // pred_check_branch
      %246 = sbr.rel (0) target = $region33
    $region32: #{_mlpseq_forward_impl.1} parent=1 // pred_region
      _
    $region33: #{_mlpseq_forward_impl.1} parent=1 // pred_fallthru
      _
    // Predicated region
    $region34: #{_mlpseq_forward_impl.1} parent=1 // pred_check
      _
    $region35: #{_mlpseq_forward_impl.1} parent=1 // pred_check_branch
      %248 = sbr.rel (0) target = $region37
    $region36: #{_mlpseq_forward_impl.1} parent=1 // pred_region
      _
    $region37: #{_mlpseq_forward_impl.1} parent=1 // pred_fallthru
      _
    %249 = vsyncpa [#allocation3], 1
    %250 = vsyncpa [#allocation5], 1

</llo_original>
